<compile_context>
chip_gen: v6e
topology: v6e:2x2x1
jax: 0.10.0
libtpu: 0.0.40
codegen_flags: <defaults>
</compile_context>

<pallas_src>
import jax
import jax.numpy as jnp
from jax.experimental import pallas as pl
from jax.experimental.pallas import tpu as pltpu


# BIG = SQRT_BIG^2 must exceed max|s| + ~104 so softplus(s - BIG) underflows to
# exactly 0 in f32, while staying small enough that BIG * 2^-24 (~2.4e-4) keeps
# the MXU-accumulation rounding on same-category scores negligible.
_SQRT_BIG = 64.0


def _softplus(x):
    # numerically stable softplus matching torch.nn.functional.softplus
    return jnp.maximum(x, 0.0) + jnp.log1p(jnp.exp(-jnp.abs(x)))


def _round_up(a, b):
    return -(-a // b) * b


# --------------------------------------------------------------------------- #
# Kernel 1: per-row features  (augmented u / f_z,  log(T + eps))
# --------------------------------------------------------------------------- #
def cpc_feature_kernel(x_ref, z_ref, c_ref,
                       w1_ref, b1_ref, w2_ref, b2_ref, w3_ref, b3_ref,
                       wsf_ref,
                       uaug_ref, fzaug_ref, logt_ref):
    x = x_ref[...]                                     # (tb, input_size)
    z = z_ref[...]                                     # (tb, Z)
    c = c_ref[...]                                     # (tb, 1) int32 (pad rows: c == C)

    h = jnp.dot(x, w1_ref[...], preferred_element_type=jnp.float32) + b1_ref[...]
    h = jnp.maximum(h, 0.0)
    f_x = jnp.dot(h, w2_ref[...], preferred_element_type=jnp.float32) + b2_ref[...]
    f_z = jnp.dot(z, w3_ref[...], preferred_element_type=jnp.float32) + b3_ref[...]

    # One wide MXU push: p_all[:, cat*Z:(cat+1)*Z] == f_x @ W_s[cat]
    p_all = jnp.dot(f_x, wsf_ref[...], preferred_element_type=jnp.float32)  # (tb, C*Z)

    zsz = f_z.shape[-1]
    csz = wsf_ref.shape[-1] // zsz
    onehot = (c == jax.lax.broadcasted_iota(jnp.int32, (1, csz), 1)).astype(jnp.float32)

    u = jnp.zeros_like(f_z)
    for cat in range(csz):                             # short static loop, VPU selects
        u = u + onehot[:, cat:cat + 1] * p_all[:, cat * zsz:(cat + 1) * zsz]

    # T from a row-wise dot over the *un-augmented* features (exact, no BIG terms).
    t = _softplus(jnp.sum(u * f_z, axis=-1, keepdims=True))        # (tb, 1)
    logt_ref[...] = jnp.log(t + 1e-16)

    # Fuse the same-category mask into the kernel-2 dot:
    #   u_aug_i . fz_aug_j = s_ij + BIG*same_ij - BIG = s_ij - BIG*(1 - same_ij)
    tb = u.shape[0]
    pad_cols = uaug_ref.shape[-1] - (zsz + csz + 1)
    pieces_u = [u, _SQRT_BIG * onehot, jnp.full((tb, 1), -_SQRT_BIG, jnp.float32)]
    pieces_z = [f_z, _SQRT_BIG * onehot, jnp.full((tb, 1), _SQRT_BIG, jnp.float32)]
    if pad_cols:
        zero_pad = jnp.zeros((tb, pad_cols), jnp.float32)
        pieces_u.append(zero_pad)
        pieces_z.append(zero_pad)
    uaug_ref[...] = jnp.concatenate(pieces_u, axis=-1)
    fzaug_ref[...] = jnp.concatenate(pieces_z, axis=-1)


# --------------------------------------------------------------------------- #
# Kernel 2: flash-style tiled scores, mask-fused, MXU reduction, tile-skip
# --------------------------------------------------------------------------- #
def cpc_score_kernel(imin_ref, imax_ref, jmin_ref, jmax_ref,
                     u_ref, fz_ref, logt_ref, out_ref):
    i = pl.program_id(0)
    j = pl.program_id(1)

    @pl.when(j == 0)
    def _():
        out_ref[...] = jnp.zeros_like(out_ref)

    # Rows are pre-sorted by category, so most (i, j) tiles have no category
    # overlap; skip their dot/softplus/accumulate entirely (EUP is the hard
    # floor of this kernel).  Range-disjointness => no same-category pair.
    overlap = jnp.logical_and(imin_ref[i] <= jmax_ref[j],
                              jmin_ref[j] <= imax_ref[i])

    @pl.when(overlap)
    def _():
        # s'[jj, ii] = fz_aug_j[jj] . u_aug_i[ii] = s - BIG*(1 - same)
        s = jax.lax.dot_general(
            fz_ref[...], u_ref[...],
            dimension_numbers=(((1,), (1,)), ((), ())),
            preferred_element_type=jnp.float32)            # (tile_j, tile_i)
        sp = _softplus(s)                                  # cross-category -> exactly 0
        # Column reduction on the (otherwise idle) MXU instead of the VPU/XLU.
        ones = jnp.ones((1, sp.shape[0]), jnp.float32)
        out_ref[...] += jax.lax.dot_general(
            ones, sp,
            dimension_numbers=(((1,), (0,)), ((), ())),
            preferred_element_type=jnp.float32)            # (1, tile_i)

    @pl.when(j == pl.num_programs(1) - 1)
    def _():
        out_ref[...] = logt_ref[...] - jnp.log(out_ref[...] + 1e-16)


# --------------------------------------------------------------------------- #
# Wrapper
# --------------------------------------------------------------------------- #
def _default_tiles(n):
    npad8 = _round_up(max(n, 1), 8)
    if npad8 <= 128:
        return npad8, npad8          # tiny: single tile
    if npad8 <= 2048:
        return 128, 128              # >=2 row blocks -> both v7x TensorCores busy
    # s/sp intermediates are 2 MiB each: safe on v7x (64 MiB physical VMEM),
    # ample headroom on v5e/v6e (128 MiB).
    return 512, 1024


def cpc_forward(x, c, z, params, *, tile_i=None, tile_j=None):
    n = x.shape[0]
    input_size = x.shape[1]
    z_size = z.shape[1]
    c_size = params["w_s"].shape[0]
    z_aug = _round_up(z_size + c_size + 1, 8)   # augmented feature dim (K of kernel-2 dot)

    if tile_i is None or tile_j is None:
        tile_i, tile_j = _default_tiles(n)
    npad = _round_up(n, max(tile_i, tile_j))
    assert npad % tile_i == 0 and npad % tile_j == 0, (n, npad, tile_i, tile_j)
    assert tile_i % 128 == 0 or tile_i == npad          # lane-dense (1, tile_i) blocks

    # ---- sort rows by category so same-category pairs become block-diagonal --
    ci = jnp.asarray(c, jnp.int32).reshape(-1)
    order = jnp.argsort(ci)
    xf = jnp.asarray(x, jnp.float32)[order]
    zf = jnp.asarray(z, jnp.float32)[order]
    cs = ci[order]

    pad = npad - n
    if pad:
        xf = jnp.pad(xf, ((0, pad), (0, 0)))
        zf = jnp.pad(zf, ((0, pad), (0, 0)))
        # pad category == c_size: all-zero one-hot -> contributes exactly 0.
        cs = jnp.pad(cs, (0, pad), constant_values=c_size)
    c_col = cs.reshape(npad, 1)

    # Per-tile category ranges (scalar-prefetched; drive the tile-skip).
    imin = cs.reshape(npad // tile_i, tile_i).min(axis=1)
    imax = cs.reshape(npad // tile_i, tile_i).max(axis=1)
    jmin = cs.reshape(npad // tile_j, tile_j).min(axis=1)
    jmax = cs.reshape(npad // tile_j, tile_j).max(axis=1)

    # Fuse the per-category bilinear weights into one (Z, C*Z) matmul operand.
    ws_flat = jnp.transpose(params["w_s"], (1, 0, 2)).reshape(z_size, c_size * z_size)
    weights = (params["w1"], params["b1"], params["w2"], params["b2"],
               params["w3"], params["b3"], ws_flat)

    def _resident(arr):
        return pl.BlockSpec(arr.shape, lambda i: (0,) * arr.ndim)

    # ---- kernel 1: per-row features (O(N), negligible) -----------------------
    u_aug, fz_aug, log_t = pl.pallas_call(
        cpc_feature_kernel,
        out_shape=(
            jax.ShapeDtypeStruct((npad, z_aug), jnp.float32),
            jax.ShapeDtypeStruct((npad, z_aug), jnp.float32),
            jax.ShapeDtypeStruct((npad, 1), jnp.float32),
        ),
        grid_spec=pltpu.PrefetchScalarGridSpec(
            num_scalar_prefetch=0,
            grid=(npad // tile_i,),
            in_specs=[
                pl.BlockSpec((tile_i, input_size), lambda i: (i, 0)),
                pl.BlockSpec((tile_i, z_size), lambda i: (i, 0)),
                pl.BlockSpec((tile_i, 1), lambda i: (i, 0)),
            ] + [_resident(w) for w in weights],
            out_specs=(
                pl.BlockSpec((tile_i, z_aug), lambda i: (i, 0)),
                pl.BlockSpec((tile_i, z_aug), lambda i: (i, 0)),
                pl.BlockSpec((tile_i, 1), lambda i: (i, 0)),
            ),
        ),
        compiler_params=pltpu.CompilerParams(
            dimension_semantics=("parallel",)),
    )(xf, zf, c_col, *weights)

    log_t_row = log_t.reshape(1, npad)        # O(N) relayout between kernels; cheap

    # ---- kernel 2: tiled N x N scores + same-category reduction --------------
    out = pl.pallas_call(
        cpc_score_kernel,
        out_shape=jax.ShapeDtypeStruct((1, npad), jnp.float32),
        grid_spec=pltpu.PrefetchScalarGridSpec(
            num_scalar_prefetch=4,
            grid=(npad // tile_i, npad // tile_j),
            in_specs=[
                pl.BlockSpec((tile_i, z_aug), lambda i, j, *_: (i, 0)),   # u_aug  (rows)
                pl.BlockSpec((tile_j, z_aug), lambda i, j, *_: (j, 0)),   # fz_aug (cols)
                pl.BlockSpec((1, tile_i), lambda i, j, *_: (0, i)),       # log T  (rows)
            ],
            out_specs=pl.BlockSpec((1, tile_i), lambda i, j, *_: (0, i)),
        ),
        compiler_params=pltpu.CompilerParams(
            dimension_semantics=("parallel", "arbitrary"),
            vmem_limit_bytes=48 * 1024 * 1024),
    )(imin, imax, jmin, jmax, u_aug, fz_aug, log_t_row)

    out_sorted = out.reshape(-1)[:n]
    # Undo the category sort.
    return jnp.zeros((n,), out_sorted.dtype).at[order].set(out_sorted)


# --------------------------------------------------------------------------- #
# Pure-JAX reference + params
# --------------------------------------------------------------------------- #
def cpc_reference(x, c, z, params):
    h = jnp.maximum(x @ params["w1"] + params["b1"], 0.0)
    f_x = h @ params["w2"] + params["b2"]
    f_z = z @ params["w3"] + params["b3"]
    wc = params["w_s"][c]                                   # (N, Z, Z)
    t = jax.nn.softplus(jnp.einsum("ni,nij,nj->n", f_x, wc, f_z))
    u = jnp.einsum("ni,nij->nj", f_x, wc)
    s = u @ f_z.T
    same = (c[:, None] == c[None, :]).astype(jnp.float32)
    neg_t = jnp.sum(jax.nn.softplus(s) * same, axis=1)
    return jnp.log(t + 1e-16) - jnp.log(neg_t + 1e-16)


def init_params(key, input_size, z_size, c_size, hidden_size):
    ks = jax.random.split(key, 7)
    scale = 0.1
    return {
        "w1": scale * jax.random.normal(ks[0], (input_size, hidden_size), jnp.float32),
        "b1": scale * jax.random.normal(ks[1], (1, hidden_size), jnp.float32),
        "w2": scale * jax.random.normal(ks[2], (hidden_size, z_size), jnp.float32),
        "b2": scale * jax.random.normal(ks[3], (1, z_size), jnp.float32),
        "w3": scale * jax.random.normal(ks[4], (z_size, z_size), jnp.float32),
        "b3": scale * jax.random.normal(ks[5], (1, z_size), jnp.float32),
        # Parameter(torch.randn(c_size, z_size, z_size))
        "w_s": jax.random.normal(ks[6], (c_size, z_size, z_size), jnp.float32),
    }


if __name__ == "__main__":
    INPUT, HIDDEN, Z, C = 16, 32, 8, 4
    root = jax.random.PRNGKey(0)

    checks = [
        (8, {}),                                   # tiny: single-tile path
        (200, {}),                                 # default tiles (128/128), padded, sorted
        (260, dict(tile_i=128, tile_j=256)),       # tile_i != tile_j, tile-skip exercised
    ]
    for n, tiles in checks:
        kx, kz, kc, kp = jax.random.split(jax.random.fold_in(root, n), 4)
        x = jax.random.normal(kx, (n, INPUT), jnp.float32)
        z = jax.random.normal(kz, (n, Z), jnp.float32)
        c = jax.random.randint(kc, (n,), 0, C, jnp.int32)
        params = init_params(kp, INPUT, Z, C, HIDDEN)

        out = jax.block_until_ready(cpc_forward(x, c, z, params, **tiles))
        ref = jax.block_until_ready(cpc_reference(x, c, z, params))

        assert out.shape == (n,)
        assert bool(jnp.all(jnp.isfinite(out)))
        assert jnp.allclose(out, ref, rtol=1e-2, atol=1e-2), (n, out, ref)

    print("KERNEL_OK")
</pallas_src>

<mosaic_0001>
module attributes {stable_mosaic.version = 11 : i64} {
  func.func @cpc_feature_kernel(%arg0: i32, %arg1: memref<8x16xf32, #tpu.memory_space<vmem>>, %arg2: memref<8x8xf32, #tpu.memory_space<vmem>>, %arg3: memref<8x1xi32, #tpu.memory_space<vmem>>, %arg4: memref<16x32xf32, #tpu.memory_space<vmem>>, %arg5: memref<1x32xf32, #tpu.memory_space<vmem>>, %arg6: memref<32x8xf32, #tpu.memory_space<vmem>>, %arg7: memref<1x8xf32, #tpu.memory_space<vmem>>, %arg8: memref<8x8xf32, #tpu.memory_space<vmem>>, %arg9: memref<1x8xf32, #tpu.memory_space<vmem>>, %arg10: memref<8x32xf32, #tpu.memory_space<vmem>>, %arg11: memref<8x16xf32, #tpu.memory_space<vmem>>, %arg12: memref<8x16xf32, #tpu.memory_space<vmem>>, %arg13: memref<8x1xf32, #tpu.memory_space<vmem>>) attributes {dimension_semantics = [#tpu.dimension_semantics<parallel>], iteration_bounds = array<i64: 1>, scalar_prefetch = 0 : i64, scratch_operands = 0 : i64, tpu.core_type = #tpu.core_type<tc>, window_params = [{transform_indices = @transform_0, window_bounds = array<i64: 8, 16>}, {transform_indices = @transform_1, window_bounds = array<i64: 8, 8>}, {transform_indices = @transform_2, window_bounds = array<i64: 8, 1>}, {pipeline_mode = #tpu.pipeline_mode<synchronous>, transform_indices = @transform_3, window_bounds = array<i64: 16, 32>}, {pipeline_mode = #tpu.pipeline_mode<synchronous>, transform_indices = @transform_4, window_bounds = array<i64: 1, 32>}, {pipeline_mode = #tpu.pipeline_mode<synchronous>, transform_indices = @transform_5, window_bounds = array<i64: 32, 8>}, {pipeline_mode = #tpu.pipeline_mode<synchronous>, transform_indices = @transform_6, window_bounds = array<i64: 1, 8>}, {pipeline_mode = #tpu.pipeline_mode<synchronous>, transform_indices = @transform_7, window_bounds = array<i64: 8, 8>}, {pipeline_mode = #tpu.pipeline_mode<synchronous>, transform_indices = @transform_8, window_bounds = array<i64: 1, 8>}, {pipeline_mode = #tpu.pipeline_mode<synchronous>, transform_indices = @transform_9, window_bounds = array<i64: 8, 32>}, {transform_indices = @transform_10, window_bounds = array<i64: 8, 16>}, {transform_indices = @transform_11, window_bounds = array<i64: 8, 16>}, {transform_indices = @transform_12, window_bounds = array<i64: 8, 1>}]} {
    %c0 = arith.constant 0 : index
    %c0_0 = arith.constant 0 : index
    %0 = vector.load %arg1[%c0, %c0_0] : memref<8x16xf32, #tpu.memory_space<vmem>>, vector<8x16xf32>
    %c0_1 = arith.constant 0 : index
    %c0_2 = arith.constant 0 : index
    %1 = vector.load %arg2[%c0_1, %c0_2] : memref<8x8xf32, #tpu.memory_space<vmem>>, vector<8x8xf32>
    %c0_3 = arith.constant 0 : index
    %c0_4 = arith.constant 0 : index
    %2 = vector.load %arg3[%c0_3, %c0_4] : memref<8x1xi32, #tpu.memory_space<vmem>>, vector<8x1xi32>
    %c0_5 = arith.constant 0 : index
    %c0_6 = arith.constant 0 : index
    %3 = vector.load %arg4[%c0_5, %c0_6] : memref<16x32xf32, #tpu.memory_space<vmem>>, vector<16x32xf32>
    %cst = arith.constant dense<0.000000e+00> : vector<8x32xf32>
    %4 = tpu.matmul %0, %3, %cst {dimension_numbers = #tpu.dot_dimension_numbers<[1], [0], [0], [1], [0, 0, 1, 1], [], []>} : vector<8x16xf32>, vector<16x32xf32>, vector<8x32xf32> -> vector<8x32xf32>
    %c0_7 = arith.constant 0 : index
    %c0_8 = arith.constant 0 : index
    %5 = vector.load %arg5[%c0_7, %c0_8] : memref<1x32xf32, #tpu.memory_space<vmem>>, vector<1x32xf32>
    %6 = vector.broadcast %5 : vector<1x32xf32> to vector<8x32xf32>
    %7 = arith.addf %4, %6 : vector<8x32xf32>
    %cst_9 = arith.constant 0.000000e+00 : f32
    %8 = vector.broadcast %cst_9 : f32 to vector<8x32xf32>
    %9 = arith.maximumf %7, %8 : vector<8x32xf32>
    %c0_10 = arith.constant 0 : index
    %c0_11 = arith.constant 0 : index
    %10 = vector.load %arg6[%c0_10, %c0_11] : memref<32x8xf32, #tpu.memory_space<vmem>>, vector<32x8xf32>
    %cst_12 = arith.constant dense<0.000000e+00> : vector<8x8xf32>
    %11 = tpu.matmul %9, %10, %cst_12 {dimension_numbers = #tpu.dot_dimension_numbers<[1], [0], [0], [1], [0, 0, 1, 1], [], []>} : vector<8x32xf32>, vector<32x8xf32>, vector<8x8xf32> -> vector<8x8xf32>
    %c0_13 = arith.constant 0 : index
    %c0_14 = arith.constant 0 : index
    %12 = vector.load %arg7[%c0_13, %c0_14] : memref<1x8xf32, #tpu.memory_space<vmem>>, vector<1x8xf32>
    %13 = vector.broadcast %12 : vector<1x8xf32> to vector<8x8xf32>
    %14 = arith.addf %11, %13 : vector<8x8xf32>
    %c0_15 = arith.constant 0 : index
    %c0_16 = arith.constant 0 : index
    %15 = vector.load %arg8[%c0_15, %c0_16] : memref<8x8xf32, #tpu.memory_space<vmem>>, vector<8x8xf32>
    %cst_17 = arith.constant dense<0.000000e+00> : vector<8x8xf32>
    %16 = tpu.matmul %1, %15, %cst_17 {dimension_numbers = #tpu.dot_dimension_numbers<[1], [0], [0], [1], [0, 0, 1, 1], [], []>} : vector<8x8xf32>, vector<8x8xf32>, vector<8x8xf32> -> vector<8x8xf32>
    %c0_18 = arith.constant 0 : index
    %c0_19 = arith.constant 0 : index
    %17 = vector.load %arg9[%c0_18, %c0_19] : memref<1x8xf32, #tpu.memory_space<vmem>>, vector<1x8xf32>
    %18 = vector.broadcast %17 : vector<1x8xf32> to vector<8x8xf32>
    %19 = arith.addf %16, %18 : vector<8x8xf32>
    %c0_20 = arith.constant 0 : index
    %c0_21 = arith.constant 0 : index
    %20 = vector.load %arg10[%c0_20, %c0_21] : memref<8x32xf32, #tpu.memory_space<vmem>>, vector<8x32xf32>
    %cst_22 = arith.constant dense<0.000000e+00> : vector<8x32xf32>
    %21 = tpu.matmul %14, %20, %cst_22 {dimension_numbers = #tpu.dot_dimension_numbers<[1], [0], [0], [1], [0, 0, 1, 1], [], []>} : vector<8x8xf32>, vector<8x32xf32>, vector<8x32xf32> -> vector<8x32xf32>
    %22 = tpu.iota {dimensions = array<i32: 1>} : vector<1x4xi32>
    %23 = vector.broadcast %2 : vector<8x1xi32> to vector<8x4xi32>
    %24 = vector.broadcast %22 : vector<1x4xi32> to vector<8x4xi32>
    %25 = arith.cmpi eq, %23, %24 : vector<8x4xi32>
    %26 = arith.extui %25 : vector<8x4xi1> to vector<8x4xi32>
    %27 = arith.sitofp %26 : vector<8x4xi32> to vector<8x4xf32>
    %cst_23 = arith.constant 0.000000e+00 : f32
    %28 = vector.broadcast %cst_23 : f32 to vector<8x8xf32>
    %29 = vector.extract_strided_slice %27 {offsets = [0, 0], sizes = [8, 1], strides = [1, 1]} : vector<8x4xf32> to vector<8x1xf32>
    %30 = vector.extract_strided_slice %21 {offsets = [0, 0], sizes = [8, 8], strides = [1, 1]} : vector<8x32xf32> to vector<8x8xf32>
    %31 = vector.broadcast %29 : vector<8x1xf32> to vector<8x8xf32>
    %32 = arith.mulf %31, %30 : vector<8x8xf32>
    %33 = arith.addf %28, %32 : vector<8x8xf32>
    %34 = vector.extract_strided_slice %27 {offsets = [0, 1], sizes = [8, 1], strides = [1, 1]} : vector<8x4xf32> to vector<8x1xf32>
    %35 = vector.extract_strided_slice %21 {offsets = [0, 8], sizes = [8, 8], strides = [1, 1]} : vector<8x32xf32> to vector<8x8xf32>
    %36 = vector.broadcast %34 : vector<8x1xf32> to vector<8x8xf32>
    %37 = arith.mulf %36, %35 : vector<8x8xf32>
    %38 = arith.addf %33, %37 : vector<8x8xf32>
    %39 = vector.extract_strided_slice %27 {offsets = [0, 2], sizes = [8, 1], strides = [1, 1]} : vector<8x4xf32> to vector<8x1xf32>
    %40 = vector.extract_strided_slice %21 {offsets = [0, 16], sizes = [8, 8], strides = [1, 1]} : vector<8x32xf32> to vector<8x8xf32>
    %41 = vector.broadcast %39 : vector<8x1xf32> to vector<8x8xf32>
    %42 = arith.mulf %41, %40 : vector<8x8xf32>
    %43 = arith.addf %38, %42 : vector<8x8xf32>
    %44 = vector.extract_strided_slice %27 {offsets = [0, 3], sizes = [8, 1], strides = [1, 1]} : vector<8x4xf32> to vector<8x1xf32>
    %45 = vector.extract_strided_slice %21 {offsets = [0, 24], sizes = [8, 8], strides = [1, 1]} : vector<8x32xf32> to vector<8x8xf32>
    %46 = vector.broadcast %44 : vector<8x1xf32> to vector<8x8xf32>
    %47 = arith.mulf %46, %45 : vector<8x8xf32>
    %48 = arith.addf %43, %47 : vector<8x8xf32>
    %49 = arith.mulf %48, %19 : vector<8x8xf32>
    %cst_24 = arith.constant dense<0.000000e+00> : vector<8xf32>
    %50 = vector.multi_reduction <add>, %49, %cst_24 [1] : vector<8x8xf32> to vector<8xf32>
    %51 = vector.shape_cast %50 : vector<8xf32> to vector<8x1xf32>
    %cst_25 = arith.constant 0.000000e+00 : f32
    %52 = vector.broadcast %cst_25 : f32 to vector<8x1xf32>
    %53 = arith.maximumf %51, %52 : vector<8x1xf32>
    %54 = math.absf %51 : vector<8x1xf32>
    %cst_26 = arith.constant 0.000000e+00 : f32
    %55 = vector.broadcast %cst_26 : f32 to vector<8x1xf32>
    %56 = arith.subf %55, %54 : vector<8x1xf32>
    %57 = math.exp %56 : vector<8x1xf32>
    %58 = math.log1p %57 : vector<8x1xf32>
    %59 = arith.addf %53, %58 : vector<8x1xf32>
    %cst_27 = arith.constant 1.000000e-16 : f32
    %60 = vector.broadcast %cst_27 : f32 to vector<8x1xf32>
    %61 = arith.addf %59, %60 : vector<8x1xf32>
    %62 = math.log %61 : vector<8x1xf32>
    %c0_28 = arith.constant 0 : index
    %c0_29 = arith.constant 0 : index
    %63 = vector.load %arg13[%c0_28, %c0_29] : memref<8x1xf32, #tpu.memory_space<vmem>>, vector<8x1xf32>
    tpu.vector_store %arg13[%c0_28, %c0_29], %62 {strides = array<i32>} : memref<8x1xf32, #tpu.memory_space<vmem>>, vector<8x1xf32>,
    %cst_30 = arith.constant 6.400000e+01 : f32
    %64 = vector.broadcast %cst_30 : f32 to vector<8x4xf32>
    %65 = arith.mulf %64, %27 : vector<8x4xf32>
    %cst_31 = arith.constant -6.400000e+01 : f32
    %66 = vector.broadcast %cst_31 : f32 to vector<8x1xf32>
    %cst_32 = arith.constant 6.400000e+01 : f32
    %67 = vector.broadcast %cst_32 : f32 to vector<8x4xf32>
    %68 = arith.mulf %67, %27 : vector<8x4xf32>
    %cst_33 = arith.constant 6.400000e+01 : f32
    %69 = vector.broadcast %cst_33 : f32 to vector<8x1xf32>
    %cst_34 = arith.constant 0.000000e+00 : f32
    %70 = vector.broadcast %cst_34 : f32 to vector<8x3xf32>
    %71 = tpu.concatenate %48, %65, %66, %70 in 1 : vector<8x8xf32>, vector<8x4xf32>, vector<8x1xf32>, vector<8x3xf32> -> vector<8x16xf32>
    %c0_35 = arith.constant 0 : index
    %c0_36 = arith.constant 0 : index
    %72 = vector.load %arg11[%c0_35, %c0_36] : memref<8x16xf32, #tpu.memory_space<vmem>>, vector<8x16xf32>
    tpu.vector_store %arg11[%c0_35, %c0_36], %71 {strides = array<i32>} : memref<8x16xf32, #tpu.memory_space<vmem>>, vector<8x16xf32>,
    %73 = tpu.concatenate %19, %68, %69, %70 in 1 : vector<8x8xf32>, vector<8x4xf32>, vector<8x1xf32>, vector<8x3xf32> -> vector<8x16xf32>
    %c0_37 = arith.constant 0 : index
    %c0_38 = arith.constant 0 : index
    %74 = vector.load %arg12[%c0_37, %c0_38] : memref<8x16xf32, #tpu.memory_space<vmem>>, vector<8x16xf32>
    tpu.vector_store %arg12[%c0_37, %c0_38], %73 {strides = array<i32>} : memref<8x16xf32, #tpu.memory_space<vmem>>, vector<8x16xf32>,
    return
  }
  func.func @transform_0(%arg0: i32) -> (i32, i32) {
    %c0_i32 = arith.constant 0 : i32
    %c0_i32_0 = arith.constant 0 : i32
    return %arg0, %c0_i32 : i32, i32
  }
  func.func @transform_1(%arg0: i32) -> (i32, i32) {
    %c0_i32 = arith.constant 0 : i32
    %c0_i32_0 = arith.constant 0 : i32
    return %arg0, %c0_i32 : i32, i32
  }
  func.func @transform_2(%arg0: i32) -> (i32, i32) {
    %c0_i32 = arith.constant 0 : i32
    %c0_i32_0 = arith.constant 0 : i32
    return %arg0, %c0_i32 : i32, i32
  }
  func.func @transform_3(%arg0: i32) -> (i32, i32) {
    %c0_i32 = arith.constant 0 : i32
    %c0_i32_0 = arith.constant 0 : i32
    %c0_i32_1 = arith.constant 0 : i32
    return %c0_i32, %c0_i32_0 : i32, i32
  }
  func.func @transform_4(%arg0: i32) -> (i32, i32) {
    %c0_i32 = arith.constant 0 : i32
    %c0_i32_0 = arith.constant 0 : i32
    %c0_i32_1 = arith.constant 0 : i32
    return %c0_i32, %c0_i32_0 : i32, i32
  }
  func.func @transform_5(%arg0: i32) -> (i32, i32) {
    %c0_i32 = arith.constant 0 : i32
    %c0_i32_0 = arith.constant 0 : i32
    %c0_i32_1 = arith.constant 0 : i32
    return %c0_i32, %c0_i32_0 : i32, i32
  }
  func.func @transform_6(%arg0: i32) -> (i32, i32) {
    %c0_i32 = arith.constant 0 : i32
    %c0_i32_0 = arith.constant 0 : i32
    %c0_i32_1 = arith.constant 0 : i32
    return %c0_i32, %c0_i32_0 : i32, i32
  }
  func.func @transform_7(%arg0: i32) -> (i32, i32) {
    %c0_i32 = arith.constant 0 : i32
    %c0_i32_0 = arith.constant 0 : i32
    %c0_i32_1 = arith.constant 0 : i32
    return %c0_i32, %c0_i32_0 : i32, i32
  }
  func.func @transform_8(%arg0: i32) -> (i32, i32) {
    %c0_i32 = arith.constant 0 : i32
    %c0_i32_0 = arith.constant 0 : i32
    %c0_i32_1 = arith.constant 0 : i32
    return %c0_i32, %c0_i32_0 : i32, i32
  }
  func.func @transform_9(%arg0: i32) -> (i32, i32) {
    %c0_i32 = arith.constant 0 : i32
    %c0_i32_0 = arith.constant 0 : i32
    %c0_i32_1 = arith.constant 0 : i32
    return %c0_i32, %c0_i32_0 : i32, i32
  }
  func.func @transform_10(%arg0: i32) -> (i32, i32) {
    %c0_i32 = arith.constant 0 : i32
    %c0_i32_0 = arith.constant 0 : i32
    return %arg0, %c0_i32 : i32, i32
  }
  func.func @transform_11(%arg0: i32) -> (i32, i32) {
    %c0_i32 = arith.constant 0 : i32
    %c0_i32_0 = arith.constant 0 : i32
    return %arg0, %c0_i32 : i32, i32
  }
  func.func @transform_12(%arg0: i32) -> (i32, i32) {
    %c0_i32 = arith.constant 0 : i32
    %c0_i32_0 = arith.constant 0 : i32
    return %arg0, %c0_i32 : i32, i32
  }
}

</mosaic_0001>

<llo_original>
// kernel: tpu_custom_call.1
$region0: #{tpu_custom_call.1}
  #allocation0 [shape = 'u32[]', space=smem, size = 0x4, offset = 0x4, fixed_abs, tag = 'smem constant byte address 0x4 - core index']
  #allocation1 [shape = 'u32[144,128]{1,0:T(1,128)}', space=vmem, size = 0x12000, scoped, tag = 'internal scratch']
  %s0 = inlined_call_operand.vmem [shape: f32[8,16], index: 0, kind: input, shape index: {}]
  %s1 = inlined_call_operand.vmem [shape: f32[8,8], index: 1, kind: input, shape index: {}]
  %s2 = inlined_call_operand.vmem [shape: s32[8,1], index: 2, kind: input, shape index: {}]
  %s3 = inlined_call_operand.vmem [shape: f32[16,32], index: 3, kind: input, shape index: {}]
  %s4 = inlined_call_operand.hbm [shape: f32[1,32], index: 4, kind: input, shape index: {}]
  %s5 = inlined_call_operand.vmem [shape: f32[32,8], index: 5, kind: input, shape index: {}]
  %s6 = inlined_call_operand.vmem [shape: f32[1,8], index: 6, kind: input, shape index: {}]
  %s7 = inlined_call_operand.vmem [shape: f32[8,8], index: 7, kind: input, shape index: {}]
  %s8 = inlined_call_operand.vmem [shape: f32[1,8], index: 8, kind: input, shape index: {}]
  %s9 = inlined_call_operand.vmem [shape: f32[8,32], index: 9, kind: input, shape index: {}]
  %s10 = inlined_call_operand.hbm [shape: f32[8,16], index: 10, kind: output, shape index: {0}]
  %s11 = inlined_call_operand.hbm [shape: f32[8,16], index: 11, kind: output, shape index: {1}]
  %s12 = inlined_call_operand.vmem [shape: f32[8,1], index: 12, kind: output, shape index: {2}]
  %13 = xla_tuple %s10, %s11, %s12
  %s14 = sld [smem:[#allocation0]]
  $region70: #{tpu_custom_call.1} parent=0
    _
  %s16 = ssub.s32 1, %s14
  %s17 = scalar_select 0, %s16, %s14
  $region1: #{tpu_custom_call.1} parent=0
    #allocation2 [shape = 'u8[512]{0}', space=vmem, size = 0x400, scoped, tag = 'input window, operand 4, single buffered']
    #allocation3 [shape = 's32[1]{0}', space=sflag, size = 0x4, scoped, tag = 'scoped memory for tpu_custom_call.1']
    #allocation4 [shape = 's32[1]{0}', space=sflag, size = 0x4, scoped, tag = 'scoped memory for tpu_custom_call.1']
    #allocation5 [shape = 'u8[4096]{0}', space=vmem, size = 0x1000, scoped, tag = 'output window, operand 0, single buffered']
    #allocation6 [shape = 'u8[4096]{0}', space=vmem, size = 0x1000, scoped, tag = 'output window, operand 1, single buffered']
    #allocation7 [shape = 's32[1]{0}', space=sflag, size = 0x4, scoped, tag = 'scoped memory for tpu_custom_call.1']
    %18 = vsyncpa [#allocation3], 0
    %19 = vsyncpa [#allocation4], 0
    %20 = vsyncpa [#allocation7], 0
    // Predicated region
    $region2: #{tpu_custom_call.1} parent=1 // pred_check
      _
    $region3: #{tpu_custom_call.1} parent=1 // pred_check_branch
      %22 = sbr.rel (0) target = $region5
    $region4: #{tpu_custom_call.1} parent=1 // pred_region
      _
    $region5: #{tpu_custom_call.1} parent=1 // pred_fallthru
      _
    // Predicated region
    $region6: #{tpu_custom_call.1} parent=1 // pred_check
      _
    $region7: #{tpu_custom_call.1} parent=1 // pred_check_branch
      %24 = sbr.rel (0) target = $region9
    $region8: #{tpu_custom_call.1} parent=1 // pred_region
      _
    $region9: #{tpu_custom_call.1} parent=1 // pred_fallthru
      _
    // Predicated region
    $region10: #{tpu_custom_call.1} parent=1 // pred_check
      _
    $region11: #{tpu_custom_call.1} parent=1 // pred_check_branch
      %26 = sbr.rel (0) target = $region13
    $region12: #{tpu_custom_call.1} parent=1 // pred_region
      _
    $region13: #{tpu_custom_call.1} parent=1 // pred_fallthru
      _
    // Predicated region
    $region14: #{tpu_custom_call.1} parent=1 // pred_check
      _
    $region15: #{tpu_custom_call.1} parent=1 // pred_check_branch
      %28 = sbr.rel (0) target = $region17
    $region16: #{tpu_custom_call.1} parent=1 // pred_region
      _
    $region17: #{tpu_custom_call.1} parent=1 // pred_fallthru
      _
    // Predicated region
    $region18: #{tpu_custom_call.1} parent=1 // pred_check
      _
    $region19: #{tpu_custom_call.1} parent=1 // pred_check_branch
      %30 = sbr.rel (0) target = $region21
    $region20: #{tpu_custom_call.1} parent=1 // pred_region
      %s32 = ssub.s32 16, 16
      %33 = vsyncadd [#allocation3], %s32
      %s35 = sshll.u32 [#allocation2], 4
      %s36 = int_to_ptr.vmem [resolvable:$true] %s35
      %38 = dma.hbm_to_vmem [thread:$0]  %s4, 16, %s36, [#allocation3]
    $region21: #{tpu_custom_call.1} parent=1 // pred_fallthru
      _
    // Predicated region
    $region22: #{tpu_custom_call.1} parent=1 // pred_check
      _
    $region23: #{tpu_custom_call.1} parent=1 // pred_check_branch
      %40 = sbr.rel (0) target = $region25
    $region24: #{tpu_custom_call.1} parent=1 // pred_region
      _
    $region25: #{tpu_custom_call.1} parent=1 // pred_fallthru
      _
    // Predicated region
    $region26: #{tpu_custom_call.1} parent=1 // pred_check
      _
    $region27: #{tpu_custom_call.1} parent=1 // pred_check_branch
      %42 = sbr.rel (0) target = $region29
    $region28: #{tpu_custom_call.1} parent=1 // pred_region
      _
    $region29: #{tpu_custom_call.1} parent=1 // pred_fallthru
      _
    // Predicated region
    $region30: #{tpu_custom_call.1} parent=1 // pred_check
      _
    $region31: #{tpu_custom_call.1} parent=1 // pred_check_branch
      %44 = sbr.rel (0) target = $region33
    $region32: #{tpu_custom_call.1} parent=1 // pred_region
      _
    $region33: #{tpu_custom_call.1} parent=1 // pred_fallthru
      _
    // Predicated region
    $region34: #{tpu_custom_call.1} parent=1 // pred_check
      _
    $region35: #{tpu_custom_call.1} parent=1 // pred_check_branch
      %46 = sbr.rel (0) target = $region37
    $region36: #{tpu_custom_call.1} parent=1 // pred_region
      _
    $region37: #{tpu_custom_call.1} parent=1 // pred_fallthru
      _
    // Predicated region
    $region38: #{tpu_custom_call.1} parent=1 // pred_check
      _
    $region39: #{tpu_custom_call.1} parent=1 // pred_check_branch
      %48 = sbr.rel (0) target = $region41
    $region40: #{tpu_custom_call.1} parent=1 // pred_region
      _
    $region41: #{tpu_custom_call.1} parent=1 // pred_fallthru
      _
    // Predicated region
    $region42: #{tpu_custom_call.1} parent=1 // pred_check
      _
    $region43: #{tpu_custom_call.1} parent=1 // pred_check_branch
      %50 = sbr.rel (0) target = $region45
    $region44: #{tpu_custom_call.1} parent=1 // pred_region
      %51 = dma.done [#allocation3], 16
    $region45: #{tpu_custom_call.1} parent=1 // pred_fallthru
      _
    %v52 = vld [vmem:[%s0] sm:$0xff]
    %v53 = vld [vmem:[%s1] sm:$0xff]
    %v54 = vld [vmem:[%s2] sm:$0xff]
    %v55 = vld [vmem:[%s3] sm:$0xff]
    %v56 = vld [vmem:[%s3 + $0x8] sm:$0xff]
    %v57 = vld [vmem:[#allocation2] sm:$0x1]
    %v59 = vlaneseq
    %v60 = vshrl.u32 %v59, 7
    %v61 = vsub.s32 0, %v60
    %v62 = vrot.slane %v57, %v61
    %vm64 = vcmask 130048
    %v66 = vsel %vm64, %v52, 0
    %68 = vmatprep.subr.mxu0 0.0
    %69 = vmatpush1.msra.mxu0 0.0
    %70 = vmatprep.subr.mxu0 0.0
    %71 = vmatpush1.msra.mxu0 0.0
    %72 = vmatprep.subr.mxu0 0.0
    %73 = vmatpush1.msra.mxu0 0.0
    %74 = vmatprep.subr.mxu0 0.0
    %75 = vmatpush1.msra.mxu0 0.0
    %76 = vmatprep.subr.mxu0 0.0
    %77 = vmatpush1.msra.mxu0 0.0
    %78 = vmatprep.subr.mxu0 0.0
    %79 = vmatpush1.msra.mxu0 0.0
    %80 = vmatprep.subr.mxu0 0.0
    %81 = vmatpush1.msra.mxu0 0.0
    %82 = vmatprep.subr.mxu0 0.0
    %83 = vmatpush1.msra.mxu0 0.0
    %84 = vmatprep.subr.mxu0 0.0
    %85 = vmatpush1.msra.mxu0 0.0
    %86 = vmatprep.subr.mxu0 0.0
    %87 = vmatpush1.msra.mxu0 0.0
    %88 = vmatprep.subr.mxu0 0.0
    %89 = vmatpush1.msra.mxu0 0.0
    %90 = vmatprep.subr.mxu0 0.0
    %91 = vmatpush1.msra.mxu0 0.0
    %92 = vmatprep.subr.mxu0 0.0
    %93 = vmatpush1.msra.mxu0 0.0
    %94 = vmatprep.subr.mxu0 0.0
    %95 = vmatpush1.msra.mxu0 0.0
    %96 = vmatprep.subr.mxu0 0.0
    %97 = vmatpush1.msra.mxu0 %v56
    %98 = vmatprep.subr.mxu0 0.0
    %99 = vmatpush1.msra.mxu0 %v55
    %100 = vmatprep.subr.mxu0 0.0
    %101 = vmatpush2.msra.mxu0 0.0
    %102 = vmatprep.subr.mxu0 0.0
    %103 = vmatpush2.msra.mxu0 0.0
    %104 = vmatprep.subr.mxu0 0.0
    %105 = vmatpush2.msra.mxu0 0.0
    %106 = vmatprep.subr.mxu0 0.0
    %107 = vmatpush2.msra.mxu0 0.0
    %108 = vmatprep.subr.mxu0 0.0
    %109 = vmatpush2.msra.mxu0 0.0
    %110 = vmatprep.subr.mxu0 0.0
    %111 = vmatpush2.msra.mxu0 0.0
    %112 = vmatprep.subr.mxu0 0.0
    %113 = vmatpush2.msra.mxu0 0.0
    %114 = vmatprep.subr.mxu0 0.0
    %115 = vmatpush2.msra.mxu0 0.0
    %116 = vmatprep.subr.mxu0 0.0
    %117 = vmatpush2.msra.mxu0 0.0
    %118 = vmatprep.subr.mxu0 0.0
    %119 = vmatpush2.msra.mxu0 0.0
    %120 = vmatprep.subr.mxu0 0.0
    %121 = vmatpush2.msra.mxu0 0.0
    %122 = vmatprep.subr.mxu0 0.0
    %123 = vmatpush2.msra.mxu0 0.0
    %124 = vmatprep.subr.mxu0 0.0
    %125 = vmatpush2.msra.mxu0 0.0
    %126 = vmatprep.subr.mxu0 0.0
    %127 = vmatpush2.msra.mxu0 0.0
    %128 = vmatprep.subr.mxu0 0.0
    %129 = vmatpush2.msra.mxu0 0.0
    %130 = vmatprep.subr.mxu0 0.0
    %131 = vmatpush2.msra.mxu0 0.0
    %132 = vmatprep.mubr.f32.mxu0 0.0
    %133 = vmatmul.mubr.f32.gmra.mxu0 %v66
    %v134 = vpop.f32.mrf.mxu0
    %v135 = vadd.f32 %v62, %v134
    %v136 = vpop.f32.mrf.mxu0
    %137 = vdwg.mxu0
    %v138 = vmax.f32 %v135, 0.0
    %v139 = vld [vmem:[%s5] sm:$0xff]
    %v140 = vld [vmem:[%s5 + $0x8] sm:$0xff]
    %v141 = vld [vmem:[%s5 + $0x10] sm:$0xff]
    %v142 = vld [vmem:[%s5 + $0x18] sm:$0xff]
    %v143 = vld [vmem:[%s6] sm:$0x1]
    %v145 = vlaneseq
    %v146 = vshrl.u32 %v145, 7
    %v147 = vsub.s32 0, %v146
    %v148 = vrot.slane %v143, %v147
    %vm150 = vcmask 261120
    %v152 = vsel %vm150, %v138, 0
    %154 = vmatprep.subr.mxu0 0.0
    %155 = vmatpush1.msra.mxu0 0.0
    %156 = vmatprep.subr.mxu0 0.0
    %157 = vmatpush1.msra.mxu0 0.0
    %158 = vmatprep.subr.mxu0 0.0
    %159 = vmatpush1.msra.mxu0 0.0
    %160 = vmatprep.subr.mxu0 0.0
    %161 = vmatpush1.msra.mxu0 0.0
    %162 = vmatprep.subr.mxu0 0.0
    %163 = vmatpush1.msra.mxu0 0.0
    %164 = vmatprep.subr.mxu0 0.0
    %165 = vmatpush1.msra.mxu0 0.0
    %166 = vmatprep.subr.mxu0 0.0
    %167 = vmatpush1.msra.mxu0 0.0
    %168 = vmatprep.subr.mxu0 0.0
    %169 = vmatpush1.msra.mxu0 0.0
    %170 = vmatprep.subr.mxu0 0.0
    %171 = vmatpush1.msra.mxu0 0.0
    %172 = vmatprep.subr.mxu0 0.0
    %173 = vmatpush1.msra.mxu0 0.0
    %174 = vmatprep.subr.mxu0 0.0
    %175 = vmatpush1.msra.mxu0 0.0
    %176 = vmatprep.subr.mxu0 0.0
    %177 = vmatpush1.msra.mxu0 0.0
    %178 = vmatprep.subr.mxu0 0.0
    %179 = vmatpush1.msra.mxu0 %v142
    %180 = vmatprep.subr.mxu0 0.0
    %181 = vmatpush1.msra.mxu0 %v141
    %182 = vmatprep.subr.mxu0 0.0
    %183 = vmatpush1.msra.mxu0 %v140
    %184 = vmatprep.subr.mxu0 0.0
    %185 = vmatpush1.msra.mxu0 %v139
    %186 = vmatprep.subr.mxu0 0.0
    %187 = vmatpush2.msra.mxu0 0.0
    %188 = vmatprep.subr.mxu0 0.0
    %189 = vmatpush2.msra.mxu0 0.0
    %190 = vmatprep.subr.mxu0 0.0
    %191 = vmatpush2.msra.mxu0 0.0
    %192 = vmatprep.subr.mxu0 0.0
    %193 = vmatpush2.msra.mxu0 0.0
    %194 = vmatprep.subr.mxu0 0.0
    %195 = vmatpush2.msra.mxu0 0.0
    %196 = vmatprep.subr.mxu0 0.0
    %197 = vmatpush2.msra.mxu0 0.0
    %198 = vmatprep.subr.mxu0 0.0
    %199 = vmatpush2.msra.mxu0 0.0
    %200 = vmatprep.subr.mxu0 0.0
    %201 = vmatpush2.msra.mxu0 0.0
    %202 = vmatprep.subr.mxu0 0.0
    %203 = vmatpush2.msra.mxu0 0.0
    %204 = vmatprep.subr.mxu0 0.0
    %205 = vmatpush2.msra.mxu0 0.0
    %206 = vmatprep.subr.mxu0 0.0
    %207 = vmatpush2.msra.mxu0 0.0
    %208 = vmatprep.subr.mxu0 0.0
    %209 = vmatpush2.msra.mxu0 0.0
    %210 = vmatprep.subr.mxu0 0.0
    %211 = vmatpush2.msra.mxu0 0.0
    %212 = vmatprep.subr.mxu0 0.0
    %213 = vmatpush2.msra.mxu0 0.0
    %214 = vmatprep.subr.mxu0 0.0
    %215 = vmatpush2.msra.mxu0 0.0
    %216 = vmatprep.subr.mxu0 0.0
    %217 = vmatpush2.msra.mxu0 0.0
    %218 = vmatprep.mubr.f32.mxu0 0.0
    %219 = vmatmul.mubr.f32.gmra.mxu0 %v152
    %v220 = vpop.f32.mrf.mxu0
    %v221 = vadd.f32 %v148, %v220
    %v222 = vpop.f32.mrf.mxu0
    %223 = vdwg.mxu0
    %v224 = vld [vmem:[%s7] sm:$0xff]
    %v225 = vld [vmem:[%s8] sm:$0x1]
    %v227 = vlaneseq
    %v228 = vshrl.u32 %v227, 7
    %v229 = vsub.s32 0, %v228
    %v230 = vrot.slane %v225, %v229
    %vm232 = vcmask 64512
    %v234 = vsel %vm232, %v53, 0
    %236 = vmatprep.subr.mxu0 0.0
    %237 = vmatpush1.msra.mxu0 0.0
    %238 = vmatprep.subr.mxu0 0.0
    %239 = vmatpush1.msra.mxu0 0.0
    %240 = vmatprep.subr.mxu0 0.0
    %241 = vmatpush1.msra.mxu0 0.0
    %242 = vmatprep.subr.mxu0 0.0
    %243 = vmatpush1.msra.mxu0 0.0
    %244 = vmatprep.subr.mxu0 0.0
    %245 = vmatpush1.msra.mxu0 0.0
    %246 = vmatprep.subr.mxu0 0.0
    %247 = vmatpush1.msra.mxu0 0.0
    %248 = vmatprep.subr.mxu0 0.0
    %249 = vmatpush1.msra.mxu0 0.0
    %250 = vmatprep.subr.mxu0 0.0
    %251 = vmatpush1.msra.mxu0 0.0
    %252 = vmatprep.subr.mxu0 0.0
    %253 = vmatpush1.msra.mxu0 0.0
    %254 = vmatprep.subr.mxu0 0.0
    %255 = vmatpush1.msra.mxu0 0.0
    %256 = vmatprep.subr.mxu0 0.0
    %257 = vmatpush1.msra.mxu0 0.0
    %258 = vmatprep.subr.mxu0 0.0
    %259 = vmatpush1.msra.mxu0 0.0
    %260 = vmatprep.subr.mxu0 0.0
    %261 = vmatpush1.msra.mxu0 0.0
    %262 = vmatprep.subr.mxu0 0.0
    %263 = vmatpush1.msra.mxu0 0.0
    %264 = vmatprep.subr.mxu0 0.0
    %265 = vmatpush1.msra.mxu0 0.0
    %266 = vmatprep.subr.mxu0 0.0
    %267 = vmatpush1.msra.mxu0 %v224
    %268 = vmatprep.subr.mxu0 0.0
    %269 = vmatpush2.msra.mxu0 0.0
    %270 = vmatprep.subr.mxu0 0.0
    %271 = vmatpush2.msra.mxu0 0.0
    %272 = vmatprep.subr.mxu0 0.0
    %273 = vmatpush2.msra.mxu0 0.0
    %274 = vmatprep.subr.mxu0 0.0
    %275 = vmatpush2.msra.mxu0 0.0
    %276 = vmatprep.subr.mxu0 0.0
    %277 = vmatpush2.msra.mxu0 0.0
    %278 = vmatprep.subr.mxu0 0.0
    %279 = vmatpush2.msra.mxu0 0.0
    %280 = vmatprep.subr.mxu0 0.0
    %281 = vmatpush2.msra.mxu0 0.0
    %282 = vmatprep.subr.mxu0 0.0
    %283 = vmatpush2.msra.mxu0 0.0
    %284 = vmatprep.subr.mxu0 0.0
    %285 = vmatpush2.msra.mxu0 0.0
    %286 = vmatprep.subr.mxu0 0.0
    %287 = vmatpush2.msra.mxu0 0.0
    %288 = vmatprep.subr.mxu0 0.0
    %289 = vmatpush2.msra.mxu0 0.0
    %290 = vmatprep.subr.mxu0 0.0
    %291 = vmatpush2.msra.mxu0 0.0
    %292 = vmatprep.subr.mxu0 0.0
    %293 = vmatpush2.msra.mxu0 0.0
    %294 = vmatprep.subr.mxu0 0.0
    %295 = vmatpush2.msra.mxu0 0.0
    %296 = vmatprep.subr.mxu0 0.0
    %297 = vmatpush2.msra.mxu0 0.0
    %298 = vmatprep.subr.mxu0 0.0
    %299 = vmatpush2.msra.mxu0 0.0
    %300 = vmatprep.mubr.f32.mxu0 0.0
    %301 = vmatmul.mubr.f32.gmra.mxu0 %v234
    %v302 = vpop.f32.mrf.mxu0
    %v303 = vadd.f32 %v230, %v302
    %v304 = vpop.f32.mrf.mxu0
    %305 = vdwg.mxu0
    %v306 = vld [vmem:[%s9] sm:$0xff]
    %v308 = vsel %vm232, %v221, 0
    %310 = vmatprep.subr.mxu0 0.0
    %311 = vmatpush1.msra.mxu0 0.0
    %312 = vmatprep.subr.mxu0 0.0
    %313 = vmatpush1.msra.mxu0 0.0
    %314 = vmatprep.subr.mxu0 0.0
    %315 = vmatpush1.msra.mxu0 0.0
    %316 = vmatprep.subr.mxu0 0.0
    %317 = vmatpush1.msra.mxu0 0.0
    %318 = vmatprep.subr.mxu0 0.0
    %319 = vmatpush1.msra.mxu0 0.0
    %320 = vmatprep.subr.mxu0 0.0
    %321 = vmatpush1.msra.mxu0 0.0
    %322 = vmatprep.subr.mxu0 0.0
    %323 = vmatpush1.msra.mxu0 0.0
    %324 = vmatprep.subr.mxu0 0.0
    %325 = vmatpush1.msra.mxu0 0.0
    %326 = vmatprep.subr.mxu0 0.0
    %327 = vmatpush1.msra.mxu0 0.0
    %328 = vmatprep.subr.mxu0 0.0
    %329 = vmatpush1.msra.mxu0 0.0
    %330 = vmatprep.subr.mxu0 0.0
    %331 = vmatpush1.msra.mxu0 0.0
    %332 = vmatprep.subr.mxu0 0.0
    %333 = vmatpush1.msra.mxu0 0.0
    %334 = vmatprep.subr.mxu0 0.0
    %335 = vmatpush1.msra.mxu0 0.0
    %336 = vmatprep.subr.mxu0 0.0
    %337 = vmatpush1.msra.mxu0 0.0
    %338 = vmatprep.subr.mxu0 0.0
    %339 = vmatpush1.msra.mxu0 0.0
    %340 = vmatprep.subr.mxu0 0.0
    %341 = vmatpush1.msra.mxu0 %v306
    %342 = vmatprep.subr.mxu0 0.0
    %343 = vmatpush2.msra.mxu0 0.0
    %344 = vmatprep.subr.mxu0 0.0
    %345 = vmatpush2.msra.mxu0 0.0
    %346 = vmatprep.subr.mxu0 0.0
    %347 = vmatpush2.msra.mxu0 0.0
    %348 = vmatprep.subr.mxu0 0.0
    %349 = vmatpush2.msra.mxu0 0.0
    %350 = vmatprep.subr.mxu0 0.0
    %351 = vmatpush2.msra.mxu0 0.0
    %352 = vmatprep.subr.mxu0 0.0
    %353 = vmatpush2.msra.mxu0 0.0
    %354 = vmatprep.subr.mxu0 0.0
    %355 = vmatpush2.msra.mxu0 0.0
    %356 = vmatprep.subr.mxu0 0.0
    %357 = vmatpush2.msra.mxu0 0.0
    %358 = vmatprep.subr.mxu0 0.0
    %359 = vmatpush2.msra.mxu0 0.0
    %360 = vmatprep.subr.mxu0 0.0
    %361 = vmatpush2.msra.mxu0 0.0
    %362 = vmatprep.subr.mxu0 0.0
    %363 = vmatpush2.msra.mxu0 0.0
    %364 = vmatprep.subr.mxu0 0.0
    %365 = vmatpush2.msra.mxu0 0.0
    %366 = vmatprep.subr.mxu0 0.0
    %367 = vmatpush2.msra.mxu0 0.0
    %368 = vmatprep.subr.mxu0 0.0
    %369 = vmatpush2.msra.mxu0 0.0
    %370 = vmatprep.subr.mxu0 0.0
    %371 = vmatpush2.msra.mxu0 0.0
    %372 = vmatprep.subr.mxu0 0.0
    %373 = vmatpush2.msra.mxu0 0.0
    %374 = vmatprep.mubr.f32.mxu0 0.0
    %375 = vmatmul.mubr.f32.gmra.mxu0 %v308
    %v376 = vpop.f32.mrf.mxu0
    %v377 = vadd.f32 0.0, %v376
    %v378 = vpop.f32.mrf.mxu0
    %379 = vdwg.mxu0
    %v380 = vlaneseq
    %v381 = vand.u32 %v380, 127
    %382 = vset.pattern.permute.xlu0 0
    %383 = vperm.xlu0 %382, %v54
    %v384 = vpop.permute.xlu0 %383
    %vm385 = vcmp.eq.s32.totalorder %v384, %v381
    %v386 = vsel %vm385, 1, 0
    %v387 = vcvt.s32.f32 %v386
    %389 = vset.pattern.permute.xlu0 0
    %390 = vperm.xlu0 %389, %v387
    %v391 = vpop.permute.xlu0 %390
    %v393 = vmul.f32 %v391, %v377
    %v394 = vadd.f32 %v393, 0.0
    %395 = vset.pattern.permute.xlu0 1
    %396 = vperm.xlu0 %395, %v387
    %v397 = vpop.permute.xlu0 %396
    %v399 = vmul.f32 %v397, %v377
    %401 = vrot.lane.b32.xlu0 %v399, 120
    %v402 = vpop.permute.xlu0 %401
    %v404 = vadd.f32 %v394, %v402
    %405 = vset.pattern.permute.xlu0 2
    %406 = vperm.xlu0 %405, %v387
    %v407 = vpop.permute.xlu0 %406
    %v409 = vmul.f32 %v407, %v377
    %411 = vrot.lane.b32.xlu0 %v409, 112
    %v412 = vpop.permute.xlu0 %411
    %v414 = vadd.f32 %v404, %v412
    %415 = vset.pattern.permute.xlu0 3
    %416 = vperm.xlu0 %415, %v387
    %v417 = vpop.permute.xlu0 %416
    %v419 = vmul.f32 %v417, %v377
    %421 = vrot.lane.b32.xlu0 %v419, 104
    %v422 = vpop.permute.xlu0 %421
    %v424 = vadd.f32 %v414, %v422
    %v425 = vmul.f32 %v424, %v303
    %v426 = vsel %vm232, %v425, 0.0
    %427 = vadd.xlane.f32.xlu0 %v426
    %v428 = vpop.xlane.xlu0 %427
    %v429 = vmax.f32 %v428, 0.0
    %v430 = vand.u32 2147483647, %v428
    %v431 = vsub.f32 0.0, %v430
    %v432 = vmul.f32 %v431, 1.442695
    %v433 = vpow.pop %v432
    %v434 = vadd.f32 %v433, 1.0
    %v435 = vlog2.pop %v434
    %v436 = vmul.f32 %v435, 0.6931472
    %v437 = vmul.f32 -0.5, %v433
    %v438 = vadd.f32 %v437, 1.0
    %v439 = vmul.f32 %v438, %v433
    %v440 = vand.u32 2147483647, %v433
    %vm441 = vcmp.lt.f32.partialorder %v440, 0.0004427343
    %v442 = vsel %vm441, %v439, %v436
    %v443 = vadd.f32 %v429, %v442
    %v444 = vadd.f32 %v443, 1e-16
    %v445 = vlog2.pop %v444
    %v446 = vmul.f32 %v445, 0.6931472
    %vm447 = vcmask 7168
    %448 = vst.msk [vmem:[%s12] sm:$0xff] %vm447, %v446
    %v449 = vmul.f32 %v387, 64.0
    %451 = vrot.lane.b32.xlu0 %v449, 8
    %v452 = vpop.permute.xlu0 %451
    %v454 = vsel %vm232, %v424, %v452
    %vm455 = vcmask 97280
    %v456 = vsel %vm455, %v454, -64.0
    %vm457 = vcmask 105472
    %v458 = vsel %vm457, %v456, 0.0
    %459 = vst.msk [vmem:[#allocation5] sm:$0xff] %vm64, %v458
    %v460 = vsel %vm232, %v303, %v452
    %v461 = vsel %vm455, %v460, 64.0
    %v462 = vsel %vm457, %v461, 0.0
    %463 = vst.msk [vmem:[#allocation6] sm:$0xff] %vm64, %v462
    // Predicated region
    $region46: #{tpu_custom_call.1} parent=1 // pred_check
      _
    $region47: #{tpu_custom_call.1} parent=1 // pred_check_branch
      %465 = sbr.rel (0) target = $region49
    $region48: #{tpu_custom_call.1} parent=1 // pred_region
      %s467 = ssub.s32 128, 128
      %468 = vsyncadd [#allocation4], %s467
      %s470 = sshll.u32 [#allocation5], 4
      %s471 = int_to_ptr.vmem [resolvable:$true] %s470
      %473 = dma.vmem_to_hbm [thread:$0]  %s471, 128, %s10, [#allocation4]
    $region49: #{tpu_custom_call.1} parent=1 // pred_fallthru
      _
    // Predicated region
    $region50: #{tpu_custom_call.1} parent=1 // pred_check
      _
    $region51: #{tpu_custom_call.1} parent=1 // pred_check_branch
      %475 = sbr.rel (0) target = $region53
    $region52: #{tpu_custom_call.1} parent=1 // pred_region
      %s477 = ssub.s32 128, 128
      %478 = vsyncadd [#allocation7], %s477
      %s480 = sshll.u32 [#allocation6], 4
      %s481 = int_to_ptr.vmem [resolvable:$true] %s480
      %483 = dma.vmem_to_hbm [thread:$0]  %s481, 128, %s11, [#allocation7]
    $region53: #{tpu_custom_call.1} parent=1 // pred_fallthru
      _
    // Predicated region
    $region54: #{tpu_custom_call.1} parent=1 // pred_check
      _
    $region55: #{tpu_custom_call.1} parent=1 // pred_check_branch
      %485 = sbr.rel (0) target = $region57
    $region56: #{tpu_custom_call.1} parent=1 // pred_region
      _
    $region57: #{tpu_custom_call.1} parent=1 // pred_fallthru
      _
    // Predicated region
    $region58: #{tpu_custom_call.1} parent=1 // pred_check
      _
    $region59: #{tpu_custom_call.1} parent=1 // pred_check_branch
      %487 = sbr.rel (0) target = $region61
    $region60: #{tpu_custom_call.1} parent=1 // pred_region
      %488 = dma.done [#allocation4], 128
    $region61: #{tpu_custom_call.1} parent=1 // pred_fallthru
      _
    // Predicated region
    $region62: #{tpu_custom_call.1} parent=1 // pred_check
      _
    $region63: #{tpu_custom_call.1} parent=1 // pred_check_branch
      %490 = sbr.rel (0) target = $region65
    $region64: #{tpu_custom_call.1} parent=1 // pred_region
      %491 = dma.done [#allocation7], 128
    $region65: #{tpu_custom_call.1} parent=1 // pred_fallthru
      _
    // Predicated region
    $region66: #{tpu_custom_call.1} parent=1 // pred_check
      _
    $region67: #{tpu_custom_call.1} parent=1 // pred_check_branch
      %493 = sbr.rel (0) target = $region69
    $region68: #{tpu_custom_call.1} parent=1 // pred_region
      _
    $region69: #{tpu_custom_call.1} parent=1 // pred_fallthru
      _
    %494 = vsyncpa [#allocation3], 1
    %495 = vsyncpa [#allocation4], 1
    %496 = vsyncpa [#allocation7], 1

</llo_original>
